<compile_context>
chip_gen: v7x
topology: tpu7x:2x2x1
jax: 0.10.0
libtpu: 0.0.40
codegen_flags: <defaults>
</compile_context>

<pallas_src>
import jax
import jax.numpy as jnp
from jax.experimental import pallas as pl
from jax.experimental.pallas import tpu as pltpu


STORAGE_DTYPE = jnp.bfloat16  # streamed-operand / matmul-weight storage dtype


def _round_up(x, m):
    return ((x + m - 1) // m) * m


def _pick_vmem_limit():
    # v5e/v6e: 128 MiB physical -> 64 MiB scoped; v7x: 64 MiB physical -> 32 MiB scoped.
    try:
        cap = pltpu.get_tpu_info().vmem_capacity_bytes
    except Exception:
        cap = 128 * 1024 * 1024
    return min(64 * 1024 * 1024, max(32 * 1024 * 1024, cap // 2))


# ----------------------------------------------------------------------------
# Pallas kernel: full base-model forward for one batch tile.
#   h          = relu(x @ W1x + f @ W1f + b1)                      (encoder, MXU, bf16->f32)
#   hp_{m,s}   = sum_H (h * W2T[{0,1}])                            (VPU mul + XLU lane reduce)
#   fp_{m,s}   = ft_flat @ WfBlkDiag_{m,s}                         (MXU -> lane-dense (TB, N_pad))
#   means      = fp_m + hp_m + b2[0]
#   stds       = softplus(fp_s + hp_s + b2[1])
# ----------------------------------------------------------------------------
def _base_model_kernel(x_ref, f_ref, ft_ref, w1x_ref, w1f_ref, b1_ref,
                       w2t_ref, wfm_ref, wfs_ref, b2_ref, means_ref, stds_ref):
    # Encoder: one row per batch element (no per-target-step replication).
    h = jnp.maximum(
        jnp.dot(x_ref[...], w1x_ref[...], preferred_element_type=jnp.float32)
        + jnp.dot(f_ref[...], w1f_ref[...], preferred_element_type=jnp.float32)
        + b1_ref[...],
        0.0,
    )                                                             # (TB, H_pad) f32

    # 2-column encoder head on the VPU/XLU: per-batch scalars, broadcast over output lanes.
    w2 = w2t_ref[...]                                             # (2, H_pad) f32
    hp_mean = jnp.sum(h * w2[0:1, :], axis=-1, keepdims=True)     # (TB, 1)
    hp_std = jnp.sum(h * w2[1:2, :], axis=-1, keepdims=True)      # (TB, 1)

    # Per-target-step head: block-diagonal MXU dot -> lane-dense (TB, N_pad) directly.
    ft = ft_ref[...]                                              # (TB, N_out*F_tgt) bf16
    fp_mean = jnp.dot(ft, wfm_ref[...], preferred_element_type=jnp.float32)  # (TB, N_pad)
    fp_std = jnp.dot(ft, wfs_ref[...], preferred_element_type=jnp.float32)   # (TB, N_pad)

    mean = fp_mean + hp_mean + b2_ref[0]
    spre = fp_std + hp_std + b2_ref[1]
    std = jnp.maximum(spre, 0.0) + jnp.log1p(jnp.exp(-jnp.abs(spre)))  # stable softplus (EUP)

    # Full-width lane-dense stores; padded lanes hold finite (unused) values.
    means_ref[...] = mean
    stds_ref[...] = std


def prepare_kernel_params(params, n_out):
    """One-time re-layout of the logical f32 params into kernel-friendly form."""
    n_in, h = params["W1x"].shape
    f_tgt = params["WfT"].shape[1]
    h_pad = _round_up(h, 128)
    n_pad = _round_up(n_out, 128)

    pad_h = ((0, 0), (0, h_pad - h))
    w1x = jnp.pad(params["W1x"], pad_h)                           # zero columns are inert
    w1f = jnp.pad(params["W1f"], pad_h)
    b1 = jnp.pad(params["b1"], pad_h)
    w2t = jnp.pad(params["W2T"], pad_h)

    # Block-diagonal expansion of the feats_tgt head:
    #   WfX[n*F_tgt + f, m] = WfT[row, f] if m == n else 0
    # so ft_flat @ WfX == einsum('bnf,f->bn') laid out lane-dense over the target steps.
    eye = jnp.eye(n_out, n_pad, dtype=jnp.float32)                # (N_out, N_pad)
    wfm = (params["WfT"][0][None, :, None] * eye[:, None, :]).reshape(n_out * f_tgt, n_pad)
    wfs = (params["WfT"][1][None, :, None] * eye[:, None, :]).reshape(n_out * f_tgt, n_pad)

    return {
        "W1x": w1x.astype(STORAGE_DTYPE),
        "W1f": w1f.astype(STORAGE_DTYPE),
        "b1": b1.astype(jnp.float32),
        "W2T": w2t.astype(jnp.float32),
        "WfM": wfm.astype(STORAGE_DTYPE),
        "WfS": wfs.astype(STORAGE_DTYPE),
        "b2": params["b2"].astype(jnp.float32),
    }


def _base_model_pallas(kparams, feats_in, inputs, feats_tgt):
    """Synthetic base model forward. Returns (means, stds), each (B, N_out, 1)."""
    B, N_in, F_in = feats_in.shape
    _, N_out, F_tgt = feats_tgt.shape
    H_pad = kparams["W1x"].shape[1]
    N_pad = kparams["WfM"].shape[1]

    # Minimal glue: reshape + dtype cast only (no concat, no N_out replication).
    x = inputs.reshape(B, N_in).astype(STORAGE_DTYPE)             # (B, N_in)
    f = feats_in.reshape(B, N_in * F_in).astype(STORAGE_DTYPE)    # (B, N_in*F_in)
    ft = feats_tgt.reshape(B, N_out * F_tgt).astype(STORAGE_DTYPE)  # lane-dense flatten

    # Batch tile: big tiles amortize the per-grid-step pipeline overhead; weights are
    # VMEM-resident so the only per-tile streamed bytes are x/f/ft + the two output slabs.
    TB = min(B, 512)
    if TB > 8:
        TB = (TB // 8) * 8                                        # sublane-aligned tiling
    nb = pl.cdiv(B, TB)

    means_p, stds_p = pl.pallas_call(
        _base_model_kernel,
        out_shape=(jax.ShapeDtypeStruct((B, N_pad), jnp.float32),
                   jax.ShapeDtypeStruct((B, N_pad), jnp.float32)),
        grid=(nb,),
        in_specs=[
            pl.BlockSpec((TB, N_in), lambda i: (i, 0)),
            pl.BlockSpec((TB, N_in * F_in), lambda i: (i, 0)),
            pl.BlockSpec((TB, N_out * F_tgt), lambda i: (i, 0)),
            pl.BlockSpec((N_in, H_pad), lambda i: (0, 0)),           # W1x (resident)
            pl.BlockSpec((N_in * F_in, H_pad), lambda i: (0, 0)),    # W1f (resident)
            pl.BlockSpec((1, H_pad), lambda i: (0, 0)),              # b1
            pl.BlockSpec((2, H_pad), lambda i: (0, 0)),              # W2^T
            pl.BlockSpec((N_out * F_tgt, N_pad), lambda i: (0, 0)),  # block-diag Wf (mean)
            pl.BlockSpec((N_out * F_tgt, N_pad), lambda i: (0, 0)),  # block-diag Wf (std)
            pl.BlockSpec(memory_space=pltpu.MemorySpace.SMEM),       # b2 scalars
        ],
        out_specs=(
            pl.BlockSpec((TB, N_pad), lambda i: (i, 0)),
            pl.BlockSpec((TB, N_pad), lambda i: (i, 0)),
        ),
        compiler_params=pltpu.CompilerParams(
            dimension_semantics=("parallel",),
            vmem_limit_bytes=_pick_vmem_limit(),
        ),
    )(x, f, ft, kparams["W1x"], kparams["W1f"], kparams["b1"],
      kparams["W2T"], kparams["WfM"], kparams["WfS"], kparams["b2"])

    means = means_p[:, :N_out, None]
    stds = stds_p[:, :N_out, None]
    return means, stds


def _base_model_ref(params, feats_in, inputs, feats_tgt):
    """Pure-JAX reference of the same math (bf16 operands / f32 accumulate, like the kernel)."""
    B, N_in, F_in = feats_in.shape
    x = inputs.reshape(B, N_in).astype(STORAGE_DTYPE)
    f = feats_in.reshape(B, N_in * F_in).astype(STORAGE_DTYPE)
    h = jax.nn.relu(
        jnp.dot(x, params["W1x"].astype(STORAGE_DTYPE), preferred_element_type=jnp.float32)
        + jnp.dot(f, params["W1f"].astype(STORAGE_DTYPE), preferred_element_type=jnp.float32)
        + params["b1"])                                               # (B, H) f32
    hp = h @ params["W2T"].T                                          # (B, 2) f32
    fp = jnp.einsum("bnf,of->bno", feats_tgt.astype(STORAGE_DTYPE),
                    params["WfT"].astype(STORAGE_DTYPE),
                    preferred_element_type=jnp.float32)               # (B, N_out, 2)
    pre = fp + hp[:, None, :] + params["b2"]
    return pre[..., 0:1], jax.nn.softplus(pre[..., 1:2])


# ----------------------------------------------------------------------------
# CNNRNN: exactly the PyTorch forward semantics — dispatch to base_models_dict[1].
# (The .to(device) calls are no-ops under JAX.)
# ----------------------------------------------------------------------------
class CNNRNN:
    def __init__(self, base_models_dict, device=None):
        self.base_models_dict = base_models_dict
        self.device = device

    def __call__(self, feats_in_dict, inputs_dict, feats_tgt_dict, norm_dict,
                 targets_dict=None):
        return self.base_models_dict[1](
            feats_in_dict[1], inputs_dict[1], feats_tgt_dict[1]
        )


def make_base_model_params(key, n_in, f_in, f_tgt, hidden):
    k1, k2, k3, k4, k5, k6 = jax.random.split(key, 6)
    scale = 0.1
    return {
        "W1x": scale * jax.random.normal(k1, (n_in, hidden), jnp.float32),
        "W1f": scale * jax.random.normal(k2, (n_in * f_in, hidden), jnp.float32),
        "b1": scale * jax.random.normal(k3, (1, hidden), jnp.float32),
        "W2T": scale * jax.random.normal(k4, (2, hidden), jnp.float32),
        "WfT": scale * jax.random.normal(k5, (2, f_tgt), jnp.float32),
        "b2": scale * jax.random.normal(k6, (2,), jnp.float32),
    }


if __name__ == "__main__":
    B, N_IN, N_OUT, F_IN, F_TGT, HIDDEN = 2, 8, 8, 4, 4, 32

    key = jax.random.PRNGKey(0)
    k_params, k_fi, k_x, k_ft = jax.random.split(key, 4)

    params = make_base_model_params(k_params, N_IN, F_IN, F_TGT, HIDDEN)
    kparams = prepare_kernel_params(params, N_OUT)

    feats_in = jax.random.normal(k_fi, (B, N_IN, F_IN), jnp.float32)
    inputs = jax.random.normal(k_x, (B, N_IN, 1), jnp.float32)
    feats_tgt = jax.random.normal(k_ft, (B, N_OUT, F_TGT), jnp.float32)

    base_model = lambda fi, x, ft: _base_model_pallas(kparams, fi, x, ft)
    model = CNNRNN(base_models_dict={1: base_model}, device=None)

    # CNNRNN.forward ignores norm_dict / targets_dict entirely (as in PyTorch).
    feats_in_dict = {1: feats_in}
    inputs_dict = {1: inputs}
    feats_tgt_dict = {1: feats_tgt}
    norm_dict = {1: jnp.ones((B, 1, 1), jnp.float32)}

    means, stds = model(feats_in_dict, inputs_dict, feats_tgt_dict, norm_dict)
    jax.block_until_ready((means, stds))

    ref_means, ref_stds = _base_model_ref(params, feats_in, inputs, feats_tgt)
    assert means.shape == (B, N_OUT, 1) and stds.shape == (B, N_OUT, 1)
    assert jnp.allclose(means, ref_means, atol=1e-3, rtol=1e-3), (
        float(jnp.max(jnp.abs(means - ref_means))))
    assert jnp.allclose(stds, ref_stds, atol=1e-3, rtol=1e-3), (
        float(jnp.max(jnp.abs(stds - ref_stds))))

    print("KERNEL_OK")
</pallas_src>

<mosaic_0001>
module attributes {stable_mosaic.version = 11 : i64} {
  func.func @_base_model_kernel(%arg0: i32, %arg1: memref<2x8xbf16, #tpu.memory_space<vmem>>, %arg2: memref<2x32xbf16, #tpu.memory_space<vmem>>, %arg3: memref<2x32xbf16, #tpu.memory_space<vmem>>, %arg4: memref<8x128xbf16, #tpu.memory_space<vmem>>, %arg5: memref<32x128xbf16, #tpu.memory_space<vmem>>, %arg6: memref<1x128xf32, #tpu.memory_space<vmem>>, %arg7: memref<2x128xf32, #tpu.memory_space<vmem>>, %arg8: memref<32x128xbf16, #tpu.memory_space<vmem>>, %arg9: memref<32x128xbf16, #tpu.memory_space<vmem>>, %arg10: memref<2xf32, #tpu.memory_space<smem>>, %arg11: memref<2x128xf32, #tpu.memory_space<vmem>>, %arg12: memref<2x128xf32, #tpu.memory_space<vmem>>) attributes {dimension_semantics = [#tpu.dimension_semantics<parallel>], iteration_bounds = array<i64: 1>, scalar_prefetch = 0 : i64, scratch_operands = 0 : i64, tpu.core_type = #tpu.core_type<tc>, window_params = [{transform_indices = @transform_0, window_bounds = array<i64: 2, 8>}, {transform_indices = @transform_1, window_bounds = array<i64: 2, 32>}, {transform_indices = @transform_2, window_bounds = array<i64: 2, 32>}, {pipeline_mode = #tpu.pipeline_mode<synchronous>, transform_indices = @transform_3, window_bounds = array<i64: 8, 128>}, {pipeline_mode = #tpu.pipeline_mode<synchronous>, transform_indices = @transform_4, window_bounds = array<i64: 32, 128>}, {pipeline_mode = #tpu.pipeline_mode<synchronous>, transform_indices = @transform_5, window_bounds = array<i64: 1, 128>}, {pipeline_mode = #tpu.pipeline_mode<synchronous>, transform_indices = @transform_6, window_bounds = array<i64: 2, 128>}, {pipeline_mode = #tpu.pipeline_mode<synchronous>, transform_indices = @transform_7, window_bounds = array<i64: 32, 128>}, {pipeline_mode = #tpu.pipeline_mode<synchronous>, transform_indices = @transform_8, window_bounds = array<i64: 32, 128>}, {transform_indices = @transform_9, window_bounds = array<i64: 2>}, {transform_indices = @transform_10, window_bounds = array<i64: 2, 128>}, {transform_indices = @transform_11, window_bounds = array<i64: 2, 128>}]} {
    %c0 = arith.constant 0 : index
    %c0_0 = arith.constant 0 : index
    %0 = vector.load %arg1[%c0, %c0_0] : memref<2x8xbf16, #tpu.memory_space<vmem>>, vector<2x8xbf16>
    %c0_1 = arith.constant 0 : index
    %c0_2 = arith.constant 0 : index
    %1 = vector.load %arg4[%c0_1, %c0_2] : memref<8x128xbf16, #tpu.memory_space<vmem>>, vector<8x128xbf16>
    %cst = arith.constant dense<0.000000e+00> : vector<2x128xf32>
    %2 = tpu.matmul %0, %1, %cst {dimension_numbers = #tpu.dot_dimension_numbers<[1], [0], [0], [1], [0, 0, 1, 1], [], []>} : vector<2x8xbf16>, vector<8x128xbf16>, vector<2x128xf32> -> vector<2x128xf32>
    %c0_3 = arith.constant 0 : index
    %c0_4 = arith.constant 0 : index
    %3 = vector.load %arg2[%c0_3, %c0_4] : memref<2x32xbf16, #tpu.memory_space<vmem>>, vector<2x32xbf16>
    %c0_5 = arith.constant 0 : index
    %c0_6 = arith.constant 0 : index
    %4 = vector.load %arg5[%c0_5, %c0_6] : memref<32x128xbf16, #tpu.memory_space<vmem>>, vector<32x128xbf16>
    %cst_7 = arith.constant dense<0.000000e+00> : vector<2x128xf32>
    %5 = tpu.matmul %3, %4, %cst_7 {dimension_numbers = #tpu.dot_dimension_numbers<[1], [0], [0], [1], [0, 0, 1, 1], [], []>} : vector<2x32xbf16>, vector<32x128xbf16>, vector<2x128xf32> -> vector<2x128xf32>
    %6 = arith.addf %2, %5 : vector<2x128xf32>
    %c0_8 = arith.constant 0 : index
    %c0_9 = arith.constant 0 : index
    %7 = vector.load %arg6[%c0_8, %c0_9] : memref<1x128xf32, #tpu.memory_space<vmem>>, vector<1x128xf32>
    %8 = vector.broadcast %7 : vector<1x128xf32> to vector<2x128xf32>
    %9 = arith.addf %6, %8 : vector<2x128xf32>
    %cst_10 = arith.constant 0.000000e+00 : f32
    %10 = vector.broadcast %cst_10 : f32 to vector<2x128xf32>
    %11 = arith.maximumf %9, %10 : vector<2x128xf32>
    %c0_11 = arith.constant 0 : index
    %c0_12 = arith.constant 0 : index
    %12 = vector.load %arg7[%c0_11, %c0_12] : memref<2x128xf32, #tpu.memory_space<vmem>>, vector<2x128xf32>
    %13 = vector.extract_strided_slice %12 {offsets = [0, 0], sizes = [1, 128], strides = [1, 1]} : vector<2x128xf32> to vector<1x128xf32>
    %14 = vector.broadcast %13 : vector<1x128xf32> to vector<2x128xf32>
    %15 = arith.mulf %11, %14 : vector<2x128xf32>
    %cst_13 = arith.constant dense<0.000000e+00> : vector<2xf32>
    %16 = vector.multi_reduction <add>, %15, %cst_13 [1] : vector<2x128xf32> to vector<2xf32>
    %17 = vector.shape_cast %16 : vector<2xf32> to vector<2x1xf32>
    %18 = vector.extract_strided_slice %12 {offsets = [1, 0], sizes = [1, 128], strides = [1, 1]} : vector<2x128xf32> to vector<1x128xf32>
    %19 = vector.broadcast %18 : vector<1x128xf32> to vector<2x128xf32>
    %20 = arith.mulf %11, %19 : vector<2x128xf32>
    %cst_14 = arith.constant dense<0.000000e+00> : vector<2xf32>
    %21 = vector.multi_reduction <add>, %20, %cst_14 [1] : vector<2x128xf32> to vector<2xf32>
    %22 = vector.shape_cast %21 : vector<2xf32> to vector<2x1xf32>
    %c0_15 = arith.constant 0 : index
    %c0_16 = arith.constant 0 : index
    %23 = vector.load %arg3[%c0_15, %c0_16] : memref<2x32xbf16, #tpu.memory_space<vmem>>, vector<2x32xbf16>
    %c0_17 = arith.constant 0 : index
    %c0_18 = arith.constant 0 : index
    %24 = vector.load %arg8[%c0_17, %c0_18] : memref<32x128xbf16, #tpu.memory_space<vmem>>, vector<32x128xbf16>
    %cst_19 = arith.constant dense<0.000000e+00> : vector<2x128xf32>
    %25 = tpu.matmul %23, %24, %cst_19 {dimension_numbers = #tpu.dot_dimension_numbers<[1], [0], [0], [1], [0, 0, 1, 1], [], []>} : vector<2x32xbf16>, vector<32x128xbf16>, vector<2x128xf32> -> vector<2x128xf32>
    %c0_20 = arith.constant 0 : index
    %c0_21 = arith.constant 0 : index
    %26 = vector.load %arg9[%c0_20, %c0_21] : memref<32x128xbf16, #tpu.memory_space<vmem>>, vector<32x128xbf16>
    %cst_22 = arith.constant dense<0.000000e+00> : vector<2x128xf32>
    %27 = tpu.matmul %23, %26, %cst_22 {dimension_numbers = #tpu.dot_dimension_numbers<[1], [0], [0], [1], [0, 0, 1, 1], [], []>} : vector<2x32xbf16>, vector<32x128xbf16>, vector<2x128xf32> -> vector<2x128xf32>
    %28 = vector.broadcast %17 : vector<2x1xf32> to vector<2x128xf32>
    %29 = arith.addf %25, %28 : vector<2x128xf32>
    %c0_23 = arith.constant 0 : index
    %30 = memref.load %arg10[%c0_23] : memref<2xf32, #tpu.memory_space<smem>>
    %31 = vector.broadcast %30 : f32 to vector<2x128xf32>
    %32 = arith.addf %29, %31 : vector<2x128xf32>
    %33 = vector.broadcast %22 : vector<2x1xf32> to vector<2x128xf32>
    %34 = arith.addf %27, %33 : vector<2x128xf32>
    %c1 = arith.constant 1 : index
    %35 = memref.load %arg10[%c1] : memref<2xf32, #tpu.memory_space<smem>>
    %36 = vector.broadcast %35 : f32 to vector<2x128xf32>
    %37 = arith.addf %34, %36 : vector<2x128xf32>
    %cst_24 = arith.constant 0.000000e+00 : f32
    %38 = vector.broadcast %cst_24 : f32 to vector<2x128xf32>
    %39 = arith.maximumf %37, %38 : vector<2x128xf32>
    %40 = math.absf %37 : vector<2x128xf32>
    %cst_25 = arith.constant 0.000000e+00 : f32
    %41 = vector.broadcast %cst_25 : f32 to vector<2x128xf32>
    %42 = arith.subf %41, %40 : vector<2x128xf32>
    %43 = math.exp %42 : vector<2x128xf32>
    %44 = math.log1p %43 : vector<2x128xf32>
    %45 = arith.addf %39, %44 : vector<2x128xf32>
    %c0_26 = arith.constant 0 : index
    %c0_27 = arith.constant 0 : index
    %46 = vector.load %arg11[%c0_26, %c0_27] : memref<2x128xf32, #tpu.memory_space<vmem>>, vector<2x128xf32>
    tpu.vector_store %arg11[%c0_26, %c0_27], %32 {strides = array<i32>} : memref<2x128xf32, #tpu.memory_space<vmem>>, vector<2x128xf32>,
    %c0_28 = arith.constant 0 : index
    %c0_29 = arith.constant 0 : index
    %47 = vector.load %arg12[%c0_28, %c0_29] : memref<2x128xf32, #tpu.memory_space<vmem>>, vector<2x128xf32>
    tpu.vector_store %arg12[%c0_28, %c0_29], %45 {strides = array<i32>} : memref<2x128xf32, #tpu.memory_space<vmem>>, vector<2x128xf32>,
    return
  }
  func.func @transform_0(%arg0: i32) -> (i32, i32) {
    %c0_i32 = arith.constant 0 : i32
    %c0_i32_0 = arith.constant 0 : i32
    return %arg0, %c0_i32 : i32, i32
  }
  func.func @transform_1(%arg0: i32) -> (i32, i32) {
    %c0_i32 = arith.constant 0 : i32
    %c0_i32_0 = arith.constant 0 : i32
    return %arg0, %c0_i32 : i32, i32
  }
  func.func @transform_2(%arg0: i32) -> (i32, i32) {
    %c0_i32 = arith.constant 0 : i32
    %c0_i32_0 = arith.constant 0 : i32
    return %arg0, %c0_i32 : i32, i32
  }
  func.func @transform_3(%arg0: i32) -> (i32, i32) {
    %c0_i32 = arith.constant 0 : i32
    %c0_i32_0 = arith.constant 0 : i32
    %c0_i32_1 = arith.constant 0 : i32
    return %c0_i32, %c0_i32_0 : i32, i32
  }
  func.func @transform_4(%arg0: i32) -> (i32, i32) {
    %c0_i32 = arith.constant 0 : i32
    %c0_i32_0 = arith.constant 0 : i32
    %c0_i32_1 = arith.constant 0 : i32
    return %c0_i32, %c0_i32_0 : i32, i32
  }
  func.func @transform_5(%arg0: i32) -> (i32, i32) {
    %c0_i32 = arith.constant 0 : i32
    %c0_i32_0 = arith.constant 0 : i32
    %c0_i32_1 = arith.constant 0 : i32
    return %c0_i32, %c0_i32_0 : i32, i32
  }
  func.func @transform_6(%arg0: i32) -> (i32, i32) {
    %c0_i32 = arith.constant 0 : i32
    %c0_i32_0 = arith.constant 0 : i32
    %c0_i32_1 = arith.constant 0 : i32
    return %c0_i32, %c0_i32_0 : i32, i32
  }
  func.func @transform_7(%arg0: i32) -> (i32, i32) {
    %c0_i32 = arith.constant 0 : i32
    %c0_i32_0 = arith.constant 0 : i32
    %c0_i32_1 = arith.constant 0 : i32
    return %c0_i32, %c0_i32_0 : i32, i32
  }
  func.func @transform_8(%arg0: i32) -> (i32, i32) {
    %c0_i32 = arith.constant 0 : i32
    %c0_i32_0 = arith.constant 0 : i32
    %c0_i32_1 = arith.constant 0 : i32
    return %c0_i32, %c0_i32_0 : i32, i32
  }
  func.func @transform_9(%arg0: i32) -> i32 {
    %c0_i32 = arith.constant 0 : i32
    %c0_i32_0 = arith.constant 0 : i32
    return %c0_i32 : i32
  }
  func.func @transform_10(%arg0: i32) -> (i32, i32) {
    %c0_i32 = arith.constant 0 : i32
    %c0_i32_0 = arith.constant 0 : i32
    return %arg0, %c0_i32 : i32, i32
  }
  func.func @transform_11(%arg0: i32) -> (i32, i32) {
    %c0_i32 = arith.constant 0 : i32
    %c0_i32_0 = arith.constant 0 : i32
    return %arg0, %c0_i32 : i32, i32
  }
}

</mosaic_0001>

<llo_original>
// kernel: tpu_custom_call.1
$region0: #{tpu_custom_call.1}
  #allocation0 [shape = 'u32[]', space=smem, size = 0x4, offset = 0x4, fixed_abs, tag = 'smem constant byte address 0x4 - core index']
  #allocation1 [shape = 'u32[144,128]{1,0:T(1,128)}', space=vmem, size = 0x12000, scoped, tag = 'internal scratch']
  %s0 = inlined_call_operand.hbm [shape: bf16[2,8], index: 0, kind: input, shape index: {}]
  %s1 = inlined_call_operand.hbm [shape: bf16[2,32], index: 1, kind: input, shape index: {}]
  %s2 = inlined_call_operand.hbm [shape: bf16[2,32], index: 2, kind: input, shape index: {}]
  %s3 = inlined_call_operand.hbm [shape: bf16[8,128], index: 3, kind: input, shape index: {}]
  %s4 = inlined_call_operand.hbm [shape: bf16[32,128], index: 4, kind: input, shape index: {}]
  %s5 = inlined_call_operand.hbm [shape: f32[1,128], index: 5, kind: input, shape index: {}]
  %s6 = inlined_call_operand.hbm [shape: f32[2,128], index: 6, kind: input, shape index: {}]
  %s7 = inlined_call_operand.hbm [shape: bf16[32,128], index: 7, kind: input, shape index: {}]
  %s8 = inlined_call_operand.hbm [shape: bf16[32,128], index: 8, kind: input, shape index: {}]
  %s9 = inlined_call_operand.hbm [shape: f32[2], index: 9, kind: input, shape index: {}]
  %s10 = inlined_call_operand.hbm [shape: f32[2,128], index: 10, kind: output, shape index: {0}]
  %s11 = inlined_call_operand.hbm [shape: f32[2,128], index: 11, kind: output, shape index: {1}]
  %12 = xla_tuple %s10, %s11
  %s13 = sld [smem:[#allocation0]]
  $region98: #{tpu_custom_call.1} parent=0
    _
  %s15 = ssub.s32 1, %s13
  %s16 = scalar_select 0, %s15, %s13
  $region1: #{tpu_custom_call.1} parent=0
    #allocation2 [shape = 'u8[512]{0}', space=vmem, size = 0x400, scoped, tag = 'input window, operand 0, single buffered']
    #allocation3 [shape = 's32[1]{0}', space=sflag, size = 0x4, scoped, tag = 'scoped memory for tpu_custom_call.1']
    #allocation4 [shape = 's32[1]{0}', space=sflag, size = 0x4, scoped, tag = 'scoped memory for tpu_custom_call.1']
    #allocation5 [shape = 's32[1]{0}', space=sflag, size = 0x4, scoped, tag = 'scoped memory for tpu_custom_call.1']
    #allocation6 [shape = 'u8[512]{0}', space=vmem, size = 0x400, scoped, tag = 'input window, operand 1, single buffered']
    #allocation7 [shape = 's32[1]{0}', space=sflag, size = 0x4, scoped, tag = 'scoped memory for tpu_custom_call.1']
    #allocation8 [shape = 'u8[512]{0}', space=vmem, size = 0x400, scoped, tag = 'input window, operand 2, single buffered']
    #allocation9 [shape = 'u8[2048]{0}', space=vmem, size = 0x800, scoped, tag = 'input window, operand 3, single buffered']
    #allocation10 [shape = 's32[1]{0}', space=sflag, size = 0x4, scoped, tag = 'scoped memory for tpu_custom_call.1']
    #allocation11 [shape = 'u8[8192]{0}', space=vmem, size = 0x2000, scoped, tag = 'input window, operand 4, single buffered']
    #allocation12 [shape = 'u8[512]{0}', space=vmem, size = 0x400, scoped, tag = 'input window, operand 5, single buffered']
    #allocation13 [shape = 's32[1]{0}', space=sflag, size = 0x4, scoped, tag = 'scoped memory for tpu_custom_call.1']
    #allocation14 [shape = 'u8[1024]{0}', space=vmem, size = 0x400, scoped, tag = 'input window, operand 6, single buffered']
    #allocation15 [shape = 'u8[8192]{0}', space=vmem, size = 0x2000, scoped, tag = 'input window, operand 7, single buffered']
    #allocation16 [shape = 's32[1]{0}', space=sflag, size = 0x4, scoped, tag = 'scoped memory for tpu_custom_call.1']
    #allocation17 [shape = 'u8[8192]{0}', space=vmem, size = 0x2000, scoped, tag = 'input window, operand 8, single buffered']
    #allocation18 [shape = 'u8[512]{0}', space=smem, size = 0x200, scoped, tag = 'input window, operand 9, single buffered']
    #allocation19 [shape = 'u8[1024]{0}', space=vmem, size = 0x400, scoped, tag = 'output window, operand 0, single buffered']
    #allocation20 [shape = 'u8[1024]{0}', space=vmem, size = 0x400, scoped, tag = 'output window, operand 1, single buffered']
    #allocation21 [shape = 's32[1]{0}', space=sflag, size = 0x4, scoped, tag = 'scoped memory for tpu_custom_call.1']
    %17 = vsyncpa [#allocation3], 0
    %18 = vsyncpa [#allocation7], 0
    %19 = vsyncpa [#allocation10], 0
    %20 = vsyncpa [#allocation13], 0
    %21 = vsyncpa [#allocation16], 0
    %22 = vsyncpa [#allocation5], 0
    %23 = vsyncpa [#allocation4], 0
    %24 = vsyncpa [#allocation21], 0
    // Predicated region
    $region2: #{tpu_custom_call.1} parent=1 // pred_check
      _
    $region3: #{tpu_custom_call.1} parent=1 // pred_check_branch
      %26 = sbr.rel (0) target = $region5
    $region4: #{tpu_custom_call.1} parent=1 // pred_region
      %s28 = ssub.s32 16, 16
      %29 = vsyncadd [#allocation3], %s28
      %s31 = sshll.u32 [#allocation2], 4
      %s32 = int_to_ptr.vmem [resolvable:$true] %s31
      %34 = dma.hbm_to_vmem [thread:$0]  %s0, 16, %s32, [#allocation3]
    $region5: #{tpu_custom_call.1} parent=1 // pred_fallthru
      _
    // Predicated region
    $region6: #{tpu_custom_call.1} parent=1 // pred_check
      _
    $region7: #{tpu_custom_call.1} parent=1 // pred_check_branch
      %36 = sbr.rel (0) target = $region9
    $region8: #{tpu_custom_call.1} parent=1 // pred_region
      %s38 = ssub.s32 16, 16
      %39 = vsyncadd [#allocation7], %s38
      %s41 = sshll.u32 [#allocation6], 4
      %s42 = int_to_ptr.vmem [resolvable:$true] %s41
      %44 = dma.hbm_to_vmem [thread:$0]  %s1, 16, %s42, [#allocation7]
    $region9: #{tpu_custom_call.1} parent=1 // pred_fallthru
      _
    // Predicated region
    $region10: #{tpu_custom_call.1} parent=1 // pred_check
      _
    $region11: #{tpu_custom_call.1} parent=1 // pred_check_branch
      %46 = sbr.rel (0) target = $region13
    $region12: #{tpu_custom_call.1} parent=1 // pred_region
      %s48 = ssub.s32 16, 16
      %49 = vsyncadd [#allocation7], %s48
      %s51 = sshll.u32 [#allocation8], 4
      %s52 = int_to_ptr.vmem [resolvable:$true] %s51
      %54 = dma.hbm_to_vmem [thread:$0]  %s2, 16, %s52, [#allocation7]
    $region13: #{tpu_custom_call.1} parent=1 // pred_fallthru
      _
    // Predicated region
    $region14: #{tpu_custom_call.1} parent=1 // pred_check
      _
    $region15: #{tpu_custom_call.1} parent=1 // pred_check_branch
      %56 = sbr.rel (0) target = $region17
    $region16: #{tpu_custom_call.1} parent=1 // pred_region
      %s58 = ssub.s32 64, 64
      %59 = vsyncadd [#allocation10], %s58
      %s61 = sshll.u32 [#allocation9], 4
      %s62 = int_to_ptr.vmem [resolvable:$true] %s61
      %64 = dma.hbm_to_vmem [thread:$0]  %s3, 64, %s62, [#allocation10]
    $region17: #{tpu_custom_call.1} parent=1 // pred_fallthru
      _
    // Predicated region
    $region18: #{tpu_custom_call.1} parent=1 // pred_check
      _
    $region19: #{tpu_custom_call.1} parent=1 // pred_check_branch
      %66 = sbr.rel (0) target = $region21
    $region20: #{tpu_custom_call.1} parent=1 // pred_region
      %s68 = ssub.s32 256, 256
      %69 = vsyncadd [#allocation10], %s68
      %s70 = sshll.u32 [#allocation11], 4
      %s71 = int_to_ptr.vmem [resolvable:$true] %s70
      %76 = dma.hbm_to_vmem [thread:$0]  %s4, 256, %s71, [#allocation10], 64, 64, 4
    $region21: #{tpu_custom_call.1} parent=1 // pred_fallthru
      _
    // Predicated region
    $region22: #{tpu_custom_call.1} parent=1 // pred_check
      _
    $region23: #{tpu_custom_call.1} parent=1 // pred_check_branch
      %78 = sbr.rel (0) target = $region25
    $region24: #{tpu_custom_call.1} parent=1 // pred_region
      %s80 = ssub.s32 16, 16
      %81 = vsyncadd [#allocation13], %s80
      %s83 = sshll.u32 [#allocation12], 4
      %s84 = int_to_ptr.vmem [resolvable:$true] %s83
      %86 = dma.hbm_to_vmem [thread:$0]  %s5, 16, %s84, [#allocation13]
    $region25: #{tpu_custom_call.1} parent=1 // pred_fallthru
      _
    // Predicated region
    $region26: #{tpu_custom_call.1} parent=1 // pred_check
      _
    $region27: #{tpu_custom_call.1} parent=1 // pred_check_branch
      %88 = sbr.rel (0) target = $region29
    $region28: #{tpu_custom_call.1} parent=1 // pred_region
      %s90 = ssub.s32 32, 32
      %91 = vsyncadd [#allocation13], %s90
      %s93 = sshll.u32 [#allocation14], 4
      %s94 = int_to_ptr.vmem [resolvable:$true] %s93
      %96 = dma.hbm_to_vmem [thread:$0]  %s6, 32, %s94, [#allocation13]
    $region29: #{tpu_custom_call.1} parent=1 // pred_fallthru
      _
    // Predicated region
    $region30: #{tpu_custom_call.1} parent=1 // pred_check
      _
    $region31: #{tpu_custom_call.1} parent=1 // pred_check_branch
      %98 = sbr.rel (0) target = $region33
    $region32: #{tpu_custom_call.1} parent=1 // pred_region
      %s100 = ssub.s32 256, 256
      %101 = vsyncadd [#allocation16], %s100
      %s102 = sshll.u32 [#allocation15], 4
      %s103 = int_to_ptr.vmem [resolvable:$true] %s102
      %108 = dma.hbm_to_vmem [thread:$0]  %s7, 256, %s103, [#allocation16], 64, 64, 4
    $region33: #{tpu_custom_call.1} parent=1 // pred_fallthru
      _
    // Predicated region
    $region34: #{tpu_custom_call.1} parent=1 // pred_check
      _
    $region35: #{tpu_custom_call.1} parent=1 // pred_check_branch
      %110 = sbr.rel (0) target = $region37
    $region36: #{tpu_custom_call.1} parent=1 // pred_region
      %s112 = ssub.s32 256, 256
      %113 = vsyncadd [#allocation16], %s112
      %s114 = sshll.u32 [#allocation17], 4
      %s115 = int_to_ptr.vmem [resolvable:$true] %s114
      %120 = dma.hbm_to_vmem [thread:$0]  %s8, 256, %s115, [#allocation16], 64, 64, 4
    $region37: #{tpu_custom_call.1} parent=1 // pred_fallthru
      _
    // Predicated region
    $region38: #{tpu_custom_call.1} parent=1 // pred_check
      _
    $region39: #{tpu_custom_call.1} parent=1 // pred_check_branch
      %122 = sbr.rel (0) target = $region41
    $region40: #{tpu_custom_call.1} parent=1 // pred_region
      %s124 = ssub.s32 16, 16
      %125 = vsyncadd [#allocation5], %s124
      %128 = dma.hbm_to_smem %s9, 16, [#allocation18], [#allocation5]
    $region41: #{tpu_custom_call.1} parent=1 // pred_fallthru
      _
    // Predicated region
    $region42: #{tpu_custom_call.1} parent=1 // pred_check
      _
    $region43: #{tpu_custom_call.1} parent=1 // pred_check_branch
      %130 = sbr.rel (0) target = $region45
    $region44: #{tpu_custom_call.1} parent=1 // pred_region
      %131 = dma.done [#allocation3], 16
    $region45: #{tpu_custom_call.1} parent=1 // pred_fallthru
      _
    // Predicated region
    $region46: #{tpu_custom_call.1} parent=1 // pred_check
      _
    $region47: #{tpu_custom_call.1} parent=1 // pred_check_branch
      %133 = sbr.rel (0) target = $region49
    $region48: #{tpu_custom_call.1} parent=1 // pred_region
      %134 = dma.done [#allocation7], 16
    $region49: #{tpu_custom_call.1} parent=1 // pred_fallthru
      _
    // Predicated region
    $region50: #{tpu_custom_call.1} parent=1 // pred_check
      _
    $region51: #{tpu_custom_call.1} parent=1 // pred_check_branch
      %136 = sbr.rel (0) target = $region53
    $region52: #{tpu_custom_call.1} parent=1 // pred_region
      %137 = dma.done [#allocation7], 16
    $region53: #{tpu_custom_call.1} parent=1 // pred_fallthru
      _
    // Predicated region
    $region54: #{tpu_custom_call.1} parent=1 // pred_check
      _
    $region55: #{tpu_custom_call.1} parent=1 // pred_check_branch
      %139 = sbr.rel (0) target = $region57
    $region56: #{tpu_custom_call.1} parent=1 // pred_region
      %140 = dma.done [#allocation10], 64
    $region57: #{tpu_custom_call.1} parent=1 // pred_fallthru
      _
    // Predicated region
    $region58: #{tpu_custom_call.1} parent=1 // pred_check
      _
    $region59: #{tpu_custom_call.1} parent=1 // pred_check_branch
      %142 = sbr.rel (0) target = $region61
    $region60: #{tpu_custom_call.1} parent=1 // pred_region
      %143 = dma.done [#allocation10], 256
    $region61: #{tpu_custom_call.1} parent=1 // pred_fallthru
      _
    // Predicated region
    $region62: #{tpu_custom_call.1} parent=1 // pred_check
      _
    $region63: #{tpu_custom_call.1} parent=1 // pred_check_branch
      %145 = sbr.rel (0) target = $region65
    $region64: #{tpu_custom_call.1} parent=1 // pred_region
      %146 = dma.done [#allocation13], 16
    $region65: #{tpu_custom_call.1} parent=1 // pred_fallthru
      _
    // Predicated region
    $region66: #{tpu_custom_call.1} parent=1 // pred_check
      _
    $region67: #{tpu_custom_call.1} parent=1 // pred_check_branch
      %148 = sbr.rel (0) target = $region69
    $region68: #{tpu_custom_call.1} parent=1 // pred_region
      %149 = dma.done [#allocation13], 32
    $region69: #{tpu_custom_call.1} parent=1 // pred_fallthru
      _
    // Predicated region
    $region70: #{tpu_custom_call.1} parent=1 // pred_check
      _
    $region71: #{tpu_custom_call.1} parent=1 // pred_check_branch
      %151 = sbr.rel (0) target = $region73
    $region72: #{tpu_custom_call.1} parent=1 // pred_region
      %152 = dma.done [#allocation16], 256
    $region73: #{tpu_custom_call.1} parent=1 // pred_fallthru
      _
    // Predicated region
    $region74: #{tpu_custom_call.1} parent=1 // pred_check
      _
    $region75: #{tpu_custom_call.1} parent=1 // pred_check_branch
      %154 = sbr.rel (0) target = $region77
    $region76: #{tpu_custom_call.1} parent=1 // pred_region
      %155 = dma.done [#allocation16], 256
    $region77: #{tpu_custom_call.1} parent=1 // pred_fallthru
      _
    // Predicated region
    $region78: #{tpu_custom_call.1} parent=1 // pred_check
      _
    $region79: #{tpu_custom_call.1} parent=1 // pred_check_branch
      %157 = sbr.rel (0) target = $region81
    $region80: #{tpu_custom_call.1} parent=1 // pred_region
      %158 = dma.done [#allocation5], 16
    $region81: #{tpu_custom_call.1} parent=1 // pred_fallthru
      _
    %159 = sfence
    %v161 = vld [vmem:[#allocation2] sm:$0x1]
    %v162 = vld [vmem:[#allocation9] sm:$0xf]
    %v163 = vld [vmem:[#allocation6] sm:$0x1]
    %v164 = vld [vmem:[#allocation11] sm:$0xf]
    %v165 = vld [vmem:[#allocation11 + $0x4] sm:$0xf]
    %v166 = vld [vmem:[#allocation11 + $0x8] sm:$0xf]
    %v167 = vld [vmem:[#allocation11 + $0xc] sm:$0xf]
    %v172 = vunpack.c.l.b16 %v164
    %v173 = vunpack.c.l.b16 %v165
    %v174 = vunpack.c.l.b16 %v166
    %v175 = vunpack.c.l.b16 %v167
    %v176 = vpack.c.b16 %v173, %v172
    %v177 = vpack.c.b16 %v175, %v174
    %vm180 = vcmask 261120
    %v182 = vsel %vm180, %v163, 0
    %184 = vmatprep.subr.bf16.mxu0 0
    %185 = vmatpush1.bf16.msra.mxu0 %v176
    %186 = vmatprep.subr.bf16.mxu0 0
    %187 = vmatpush1.bf16.msra.mxu0 %v177
    %188 = vmatprep.subr.bf16.mxu0 0
    %189 = vmatpush1.bf16.msra.mxu0 0
    %190 = vmatprep.subr.bf16.mxu0 0
    %191 = vmatpush1.bf16.msra.mxu0 0
    %192 = vmatprep.subr.bf16.mxu0 0
    %193 = vmatpush1.bf16.msra.mxu0 0
    %194 = vmatprep.subr.bf16.mxu0 0
    %195 = vmatpush1.bf16.msra.mxu0 0
    %196 = vmatprep.subr.bf16.mxu0 0
    %197 = vmatpush1.bf16.msra.mxu0 0
    %198 = vmatprep.subr.bf16.mxu0 0
    %199 = vmatpush1.bf16.msra.mxu0 0
    %200 = vmatprep.subr.bf16.mxu0 0
    %201 = vmatpush1.bf16.msra.mxu0 0
    %202 = vmatprep.subr.bf16.mxu0 0
    %203 = vmatpush1.bf16.msra.mxu0 0
    %204 = vmatprep.subr.bf16.mxu0 0
    %205 = vmatpush1.bf16.msra.mxu0 0
    %206 = vmatprep.subr.bf16.mxu0 0
    %207 = vmatpush1.bf16.msra.mxu0 0
    %208 = vmatprep.subr.bf16.mxu0 0
    %209 = vmatpush1.bf16.msra.mxu0 0
    %210 = vmatprep.subr.bf16.mxu0 0
    %211 = vmatpush1.bf16.msra.mxu0 0
    %212 = vmatprep.subr.bf16.mxu0 0
    %213 = vmatpush1.bf16.msra.mxu0 0
    %214 = vmatprep.subr.bf16.mxu0 0
    %215 = vmatpush1.bf16.msra.mxu0 0
    %216 = vmatprep.mubr.bf16.mxu0 0
    %217 = vmatmul.mubr.bf16.gmra.mrb[0].mxu0 %v182
    %v218 = vpop.f32.mrb[0].mxu0
    %v219 = vadd.f32 0.0, %v218
    %v220 = vpop.f32.mrb[0].mxu0
    %v221 = vpop.f32.mrb[0].mxu0
    %v222 = vpop.f32.mrb[0].mxu0
    %223 = vdwg.mxu0
    %vm224 = vcmask 64512
    %v226 = vsel %vm224, %v161, 0
    %vm228 = vcmask 1043456
    %v230 = vsel %vm228, %v162, 0
    %232 = vmatprep.subr.bf16.mxu0 0
    %233 = vmatpush1.bf16.msra.mxu0 %v230
    %234 = vmatprep.subr.bf16.mxu0 0
    %235 = vmatpush1.bf16.msra.mxu0 0
    %236 = vmatprep.subr.bf16.mxu0 0
    %237 = vmatpush1.bf16.msra.mxu0 0
    %238 = vmatprep.subr.bf16.mxu0 0
    %239 = vmatpush1.bf16.msra.mxu0 0
    %240 = vmatprep.subr.bf16.mxu0 0
    %241 = vmatpush1.bf16.msra.mxu0 0
    %242 = vmatprep.subr.bf16.mxu0 0
    %243 = vmatpush1.bf16.msra.mxu0 0
    %244 = vmatprep.subr.bf16.mxu0 0
    %245 = vmatpush1.bf16.msra.mxu0 0
    %246 = vmatprep.subr.bf16.mxu0 0
    %247 = vmatpush1.bf16.msra.mxu0 0
    %248 = vmatprep.subr.bf16.mxu0 0
    %249 = vmatpush1.bf16.msra.mxu0 0
    %250 = vmatprep.subr.bf16.mxu0 0
    %251 = vmatpush1.bf16.msra.mxu0 0
    %252 = vmatprep.subr.bf16.mxu0 0
    %253 = vmatpush1.bf16.msra.mxu0 0
    %254 = vmatprep.subr.bf16.mxu0 0
    %255 = vmatpush1.bf16.msra.mxu0 0
    %256 = vmatprep.subr.bf16.mxu0 0
    %257 = vmatpush1.bf16.msra.mxu0 0
    %258 = vmatprep.subr.bf16.mxu0 0
    %259 = vmatpush1.bf16.msra.mxu0 0
    %260 = vmatprep.subr.bf16.mxu0 0
    %261 = vmatpush1.bf16.msra.mxu0 0
    %262 = vmatprep.subr.bf16.mxu0 0
    %263 = vmatpush1.bf16.msra.mxu0 0
    %264 = vmatprep.mubr.bf16.mxu0 0
    %265 = vmatmul.mubr.bf16.gmra.mrb[0].mxu0 %v226
    %v266 = vpop.f32.mrb[0].mxu0
    %v267 = vadd.f32 %v219, %v266
    %v268 = vpop.f32.mrb[0].mxu0
    %v269 = vpop.f32.mrb[0].mxu0
    %v270 = vpop.f32.mrb[0].mxu0
    %271 = vdwg.mxu0
    %v272 = vld [vmem:[#allocation12] sm:$0x1]
    %v274 = vlaneseq
    %v275 = vshrl.u32 %v274, 7
    %v276 = vsub.s32 0, %v275
    %v277 = vrot.slane %v272, %v276
    %v279 = vadd.f32 %v267, %v277
    %v280 = vmax.f32 %v279, 0.0
    %v281 = vld [vmem:[#allocation14] sm:$0x3]
    %v282 = vlaneseq
    %v283 = vshrl.u32 %v282, 7
    %v284 = vsub.s32 0, %v283
    %v285 = vrot.slane %v281, %v284
    %v286 = vmul.f32 %v280, %v285
    %vm287 = vcmask 1041408
    %v288 = vsel %vm287, %v286, 0.0
    %289 = vadd.xlane.f32.xlu0 %v288
    %v290 = vpop.xlane.xlu0 %289
    %v291 = vlaneseq
    %v292 = vshrl.u32 %v291, 7
    %v293 = vsub.s32 1, %v292
    %v294 = vrot.slane %v281, %v293
    %v295 = vmul.f32 %v280, %v294
    %v296 = vsel %vm287, %v295, 0.0
    %297 = vadd.xlane.f32.xlu0 %v296
    %v298 = vpop.xlane.xlu0 %297
    %v299 = vld [vmem:[#allocation8] sm:$0x1]
    %v300 = vld [vmem:[#allocation15] sm:$0xf]
    %v301 = vld [vmem:[#allocation15 + $0x4] sm:$0xf]
    %v302 = vld [vmem:[#allocation15 + $0x8] sm:$0xf]
    %v303 = vld [vmem:[#allocation15 + $0xc] sm:$0xf]
    %v304 = vld [vmem:[#allocation17] sm:$0xf]
    %v305 = vld [vmem:[#allocation17 + $0x4] sm:$0xf]
    %v306 = vld [vmem:[#allocation17 + $0x8] sm:$0xf]
    %v307 = vld [vmem:[#allocation17 + $0xc] sm:$0xf]
    %v312 = vunpack.c.l.b16 %v300
    %v313 = vunpack.c.l.b16 %v301
    %v314 = vunpack.c.l.b16 %v302
    %v315 = vunpack.c.l.b16 %v303
    %v316 = vpack.c.b16 %v313, %v312
    %v317 = vpack.c.b16 %v315, %v314
    %v321 = vsel %vm180, %v299, 0
    %323 = vmatprep.subr.bf16.mxu0 0
    %324 = vmatpush1.bf16.msra.mxu0 %v316
    %325 = vmatprep.subr.bf16.mxu0 0
    %326 = vmatpush1.bf16.msra.mxu0 %v317
    %327 = vmatprep.subr.bf16.mxu0 0
    %328 = vmatpush1.bf16.msra.mxu0 0
    %329 = vmatprep.subr.bf16.mxu0 0
    %330 = vmatpush1.bf16.msra.mxu0 0
    %331 = vmatprep.subr.bf16.mxu0 0
    %332 = vmatpush1.bf16.msra.mxu0 0
    %333 = vmatprep.subr.bf16.mxu0 0
    %334 = vmatpush1.bf16.msra.mxu0 0
    %335 = vmatprep.subr.bf16.mxu0 0
    %336 = vmatpush1.bf16.msra.mxu0 0
    %337 = vmatprep.subr.bf16.mxu0 0
    %338 = vmatpush1.bf16.msra.mxu0 0
    %339 = vmatprep.subr.bf16.mxu0 0
    %340 = vmatpush1.bf16.msra.mxu0 0
    %341 = vmatprep.subr.bf16.mxu0 0
    %342 = vmatpush1.bf16.msra.mxu0 0
    %343 = vmatprep.subr.bf16.mxu0 0
    %344 = vmatpush1.bf16.msra.mxu0 0
    %345 = vmatprep.subr.bf16.mxu0 0
    %346 = vmatpush1.bf16.msra.mxu0 0
    %347 = vmatprep.subr.bf16.mxu0 0
    %348 = vmatpush1.bf16.msra.mxu0 0
    %349 = vmatprep.subr.bf16.mxu0 0
    %350 = vmatpush1.bf16.msra.mxu0 0
    %351 = vmatprep.subr.bf16.mxu0 0
    %352 = vmatpush1.bf16.msra.mxu0 0
    %353 = vmatprep.subr.bf16.mxu0 0
    %354 = vmatpush1.bf16.msra.mxu0 0
    %355 = vmatprep.mubr.bf16.mxu0 0
    %356 = vmatmul.mubr.bf16.gmra.mrb[0].mxu0 %v321
    %v357 = vpop.f32.mrb[0].mxu0
    %v358 = vadd.f32 %v290, %v357
    %v359 = vpop.f32.mrb[0].mxu0
    %v360 = vpop.f32.mrb[0].mxu0
    %v361 = vpop.f32.mrb[0].mxu0
    %362 = vdwg.mxu0
    %s363 = sld [smem:[#allocation18]]
    %v364 = vstv %s363
    %v365 = vadd.f32 %v358, %v364
    %v370 = vunpack.c.l.b16 %v304
    %v371 = vunpack.c.l.b16 %v305
    %v372 = vunpack.c.l.b16 %v306
    %v373 = vunpack.c.l.b16 %v307
    %v374 = vpack.c.b16 %v371, %v370
    %v375 = vpack.c.b16 %v373, %v372
    %378 = vmatprep.subr.bf16.mxu0 0
    %379 = vmatpush1.bf16.msra.mxu0 %v374
    %380 = vmatprep.subr.bf16.mxu0 0
    %381 = vmatpush1.bf16.msra.mxu0 %v375
    %382 = vmatprep.subr.bf16.mxu0 0
    %383 = vmatpush1.bf16.msra.mxu0 0
    %384 = vmatprep.subr.bf16.mxu0 0
    %385 = vmatpush1.bf16.msra.mxu0 0
    %386 = vmatprep.subr.bf16.mxu0 0
    %387 = vmatpush1.bf16.msra.mxu0 0
    %388 = vmatprep.subr.bf16.mxu0 0
    %389 = vmatpush1.bf16.msra.mxu0 0
    %390 = vmatprep.subr.bf16.mxu0 0
    %391 = vmatpush1.bf16.msra.mxu0 0
    %392 = vmatprep.subr.bf16.mxu0 0
    %393 = vmatpush1.bf16.msra.mxu0 0
    %394 = vmatprep.subr.bf16.mxu0 0
    %395 = vmatpush1.bf16.msra.mxu0 0
    %396 = vmatprep.subr.bf16.mxu0 0
    %397 = vmatpush1.bf16.msra.mxu0 0
    %398 = vmatprep.subr.bf16.mxu0 0
    %399 = vmatpush1.bf16.msra.mxu0 0
    %400 = vmatprep.subr.bf16.mxu0 0
    %401 = vmatpush1.bf16.msra.mxu0 0
    %402 = vmatprep.subr.bf16.mxu0 0
    %403 = vmatpush1.bf16.msra.mxu0 0
    %404 = vmatprep.subr.bf16.mxu0 0
    %405 = vmatpush1.bf16.msra.mxu0 0
    %406 = vmatprep.subr.bf16.mxu0 0
    %407 = vmatpush1.bf16.msra.mxu0 0
    %408 = vmatprep.subr.bf16.mxu0 0
    %409 = vmatpush1.bf16.msra.mxu0 0
    %410 = vmatprep.mubr.bf16.mxu0 0
    %411 = vmatmul.mubr.bf16.gmra.mrb[0].mxu0 %v321
    %v412 = vpop.f32.mrb[0].mxu0
    %v413 = vadd.f32 %v298, %v412
    %v414 = vpop.f32.mrb[0].mxu0
    %v415 = vpop.f32.mrb[0].mxu0
    %v416 = vpop.f32.mrb[0].mxu0
    %417 = vdwg.mxu0
    %s418 = sld [smem:[#allocation18 + $0x1]]
    %v419 = vstv %s418
    %v420 = vadd.f32 %v413, %v419
    %v421 = vmax.f32 %v420, 0.0
    %v422 = vand.u32 2147483647, %v420
    %v423 = vsub.f32 0.0, %v422
    %v424 = vmul.f32 %v423, 1.442695
    %v425 = vpow.pop %v424
    %v426 = vadd.f32 %v425, 1.0
    %v427 = vlog2.pop %v426
    %v428 = vmul.f32 %v427, 0.6931472
    %v429 = vmul.f32 -0.5, %v425
    %v430 = vadd.f32 %v429, 1.0
    %v431 = vmul.f32 %v430, %v425
    %v432 = vand.u32 2147483647, %v425
    %vm433 = vcmp.lt.f32.partialorder %v432, 0.0004427343
    %v434 = vsel %vm433, %v431, %v428
    %v435 = vadd.f32 %v421, %v434
    %436 = vst [vmem:[#allocation19] sm:$0x3] %v365
    %437 = vst [vmem:[#allocation20] sm:$0x3] %v435
    // Predicated region
    $region82: #{tpu_custom_call.1} parent=1 // pred_check
      _
    $region83: #{tpu_custom_call.1} parent=1 // pred_check_branch
      %439 = sbr.rel (0) target = $region85
    $region84: #{tpu_custom_call.1} parent=1 // pred_region
      %s441 = ssub.s32 32, 32
      %442 = vsyncadd [#allocation4], %s441
      %s444 = sshll.u32 [#allocation19], 4
      %s445 = int_to_ptr.vmem [resolvable:$true] %s444
      %447 = dma.vmem_to_hbm [thread:$0]  %s445, 32, %s10, [#allocation4]
    $region85: #{tpu_custom_call.1} parent=1 // pred_fallthru
      _
    // Predicated region
    $region86: #{tpu_custom_call.1} parent=1 // pred_check
      _
    $region87: #{tpu_custom_call.1} parent=1 // pred_check_branch
      %449 = sbr.rel (0) target = $region89
    $region88: #{tpu_custom_call.1} parent=1 // pred_region
      %s451 = ssub.s32 32, 32
      %452 = vsyncadd [#allocation21], %s451
      %s454 = sshll.u32 [#allocation20], 4
      %s455 = int_to_ptr.vmem [resolvable:$true] %s454
      %457 = dma.vmem_to_hbm [thread:$0]  %s455, 32, %s11, [#allocation21]
    $region89: #{tpu_custom_call.1} parent=1 // pred_fallthru
      _
    // Predicated region
    $region90: #{tpu_custom_call.1} parent=1 // pred_check
      _
    $region91: #{tpu_custom_call.1} parent=1 // pred_check_branch
      %459 = sbr.rel (0) target = $region93
    $region92: #{tpu_custom_call.1} parent=1 // pred_region
      %460 = dma.done [#allocation4], 32
    $region93: #{tpu_custom_call.1} parent=1 // pred_fallthru
      _
    // Predicated region
    $region94: #{tpu_custom_call.1} parent=1 // pred_check
      _
    $region95: #{tpu_custom_call.1} parent=1 // pred_check_branch
      %462 = sbr.rel (0) target = $region97
    $region96: #{tpu_custom_call.1} parent=1 // pred_region
      %463 = dma.done [#allocation21], 32
    $region97: #{tpu_custom_call.1} parent=1 // pred_fallthru
      _
    %464 = vsyncpa [#allocation3], 1
    %465 = vsyncpa [#allocation7], 1
    %466 = vsyncpa [#allocation10], 1
    %467 = vsyncpa [#allocation13], 1
    %468 = vsyncpa [#allocation16], 1
    %469 = vsyncpa [#allocation4], 1
    %470 = vsyncpa [#allocation21], 1
    %471 = vsyncpa [#allocation5], 1

</llo_original>
